<compile_context>
chip_gen: v6e
topology: v6e:2x2x1
jax: 0.10.0
libtpu: 0.0.40
codegen_flags: <defaults>
</compile_context>

<pallas_src>
import functools

import jax
import jax.numpy as jnp
from jax import lax
from jax.experimental import pallas as pl
from jax.experimental.pallas import tpu as pltpu


def _single_step_kernel(scale_ref, p_ref, t_ref, w_ref, out_ref):
    """Whole problem in one grid step (typical pose-estimation sizes).

    scale_ref: (1, 1) f32 SMEM  -- 1 / (num_joints * [batch])
    p_ref/t_ref/w_ref: (B, J*C) source-dtype VMEM blocks (weight already has
                       zeros on coords >= 2, so no coordinate mask is needed)
    out_ref  : (1, 1) f32
    """
    p = p_ref[...].astype(jnp.float32)
    t = t_ref[...].astype(jnp.float32)
    w = w_ref[...].astype(jnp.float32)
    d = p - t
    out_ref[...] = jnp.sum(d * d * w, keepdims=True) * scale_ref[0, 0]


def _tiled_kernel(scale_ref, p_ref, t_ref, w_ref, out_ref, acc_ref, *,
                  batch, tile_b):
    """Batch-tiled reduction for large B.

    acc_ref: (1, J*C) f32 VMEM scratch, resident across the grid.  Steady-state
    steps only do a sublane reduce + vector add; the cross-lane reduce to a
    scalar and the scale multiply happen once, on the last step.  The row mask
    (partial last tile) is also only paid on the last step.
    """
    pid = pl.program_id(0)
    is_last = pid == pl.num_programs(0) - 1

    @pl.when(pid == 0)
    def _init():
        acc_ref[...] = jnp.zeros_like(acc_ref)

    # Upcast AFTER the load: inputs may stay bf16 in HBM (halves DMA bytes);
    # accumulation is f32 regardless of input dtype.
    p = p_ref[...].astype(jnp.float32)
    t = t_ref[...].astype(jnp.float32)
    w = w_ref[...].astype(jnp.float32)
    d = p - t
    contrib = d * d * w                                   # (tile_b, J*C)

    @pl.when(jnp.logical_not(is_last))
    def _accumulate():
        acc_ref[...] += jnp.sum(contrib, axis=0, keepdims=True)

    @pl.when(is_last)
    def _finalize():
        # The last tile may run past `batch`; OOB block data is undefined, so
        # select it away AFTER the multiply (quarantines possible NaN/Inf).
        r_idx = lax.broadcasted_iota(jnp.int32, contrib.shape, 0) + pid * tile_b
        masked = jnp.where(r_idx < batch, contrib, 0.0)
        total = acc_ref[...] + jnp.sum(masked, axis=0, keepdims=True)
        out_ref[...] = jnp.sum(total, keepdims=True) * scale_ref[0, 0]


def integral_mse_loss(output, target, target_weight, size_average=True, *,
                      tile_b=None, single_step_max_rows=2048):
    """Matches IntegralMSELoss.forward.

    output, target : (B, J, C >= 2)  (any float dtype; accumulates in f32)
    target_weight  : (B, J, 1) or (B, J, 2)   (PyTorch-broadcast-valid shapes)
    """
    assert output.ndim == 3 and output.shape == target.shape
    B, J, C = output.shape
    assert C >= 2

    wc = target_weight.shape[-1]
    assert target_weight.shape[:2] == (B, J) and wc in (1, 2), target_weight.shape

    # Fold the [:, :, :2] selection and the weight broadcast into the (tiny)
    # weight: zeros on coords >= 2 so the score channel never contributes.
    # These are cheap XLA ops on <= B*J*C elements, done once per call.
    w_xy = jnp.broadcast_to(target_weight, (B, J, 2))
    w_full = jnp.pad(w_xy, ((0, 0), (0, 0), (0, C - 2))) if C > 2 else w_xy

    # Lane-dense, metadata-only flattening: (B, J, C) -> (B, J*C).
    JC = J * C
    p2 = output.reshape(B, JC)
    t2 = target.reshape(B, JC)
    w2 = w_full.reshape(B, JC)

    # size_average only changes this runtime scalar -> no recompile.
    inv_scale = 1.0 / (float(J) * (float(B) if size_average else 1.0))
    scale_arr = jnp.full((1, 1), inv_scale, dtype=jnp.float32)

    if tile_b is not None:
        tb = min(int(tile_b), B)
    else:
        tb = B if B <= single_step_max_rows else 2048

    smem_spec = pl.BlockSpec(memory_space=pltpu.MemorySpace.SMEM)

    if tb >= B:
        # ---- Single grid step: overhead-bound regime, no pipeline phases. ----
        out = pl.pallas_call(
            _single_step_kernel,
            out_shape=jax.ShapeDtypeStruct((1, 1), jnp.float32),
            grid_spec=pltpu.PrefetchScalarGridSpec(
                num_scalar_prefetch=0,
                grid=(1,),
                in_specs=[
                    smem_spec,                                   # inv_scale
                    pl.BlockSpec((B, JC), lambda i: (0, 0)),     # output
                    pl.BlockSpec((B, JC), lambda i: (0, 0)),     # target
                    pl.BlockSpec((B, JC), lambda i: (0, 0)),     # weight
                ],
                out_specs=pl.BlockSpec((1, 1), lambda i: (0, 0)),
            ),
            compiler_params=pltpu.CompilerParams(
                dimension_semantics=("arbitrary",)),
        )(scale_arr, p2, t2, w2)
    else:
        # ---- Large-B path: batch-tiled grid with resident vector accumulator.
        tb = max(8, (tb // 8) * 8)          # sublane-aligned block rows
        grid = (pl.cdiv(B, tb),)
        kernel = functools.partial(_tiled_kernel, batch=B, tile_b=tb)
        out = pl.pallas_call(
            kernel,
            out_shape=jax.ShapeDtypeStruct((1, 1), jnp.float32),
            grid_spec=pltpu.PrefetchScalarGridSpec(
                num_scalar_prefetch=0,
                grid=grid,
                in_specs=[
                    smem_spec,                                   # inv_scale
                    pl.BlockSpec((tb, JC), lambda i: (i, 0)),    # output
                    pl.BlockSpec((tb, JC), lambda i: (i, 0)),    # target
                    pl.BlockSpec((tb, JC), lambda i: (i, 0)),    # weight
                ],
                out_specs=pl.BlockSpec((1, 1), lambda i: (0, 0)),
                scratch_shapes=[pltpu.VMEM((1, JC), jnp.float32)],
            ),
            compiler_params=pltpu.CompilerParams(
                dimension_semantics=("arbitrary",)),
        )(scale_arr, p2, t2, w2)

    return out[0, 0]


def _reference(output, target, target_weight, size_average=True):
    B, J = output.shape[0], output.shape[1]
    sq = (output[:, :, :2] - target[:, :, :2]) ** 2
    sq = sq * target_weight
    total = sq.sum() / J
    return total / B if size_average else total


if __name__ == "__main__":
    key = jax.random.PRNGKey(0)
    ks = jax.random.split(key, 6)

    # --- Test 1: small shapes, single-step path, (B, J, 1) weight, both modes.
    B, J, C = 2, 16, 3  # batch, joints, (x, y, score)
    output = jax.random.normal(ks[0], (B, J, C), dtype=jnp.float32)
    target = jax.random.normal(ks[1], (B, J, C), dtype=jnp.float32)
    tw = jax.random.uniform(ks[2], (B, J, 1), dtype=jnp.float32)
    for size_average in (True, False):
        got = jax.block_until_ready(
            integral_mse_loss(output, target, tw, size_average))
        want = _reference(output, target, tw, size_average)
        assert jnp.allclose(got, want, rtol=1e-5, atol=1e-6), (size_average, got, want)

    # --- Test 2: tiled path with a batch remainder + (B, J, 2) weight.
    B2, J2, C2 = 37, 17, 3
    out2 = jax.random.normal(ks[3], (B2, J2, C2), dtype=jnp.float32)
    tgt2 = jax.random.normal(ks[4], (B2, J2, C2), dtype=jnp.float32)
    tw2 = jax.random.uniform(ks[5], (B2, J2, 2), dtype=jnp.float32)
    got2 = jax.block_until_ready(
        integral_mse_loss(out2, tgt2, tw2, True, tile_b=16))
    want2 = _reference(out2, tgt2, tw2, True)
    assert jnp.allclose(got2, want2, rtol=1e-5, atol=1e-5), (got2, want2)

    # --- Test 3: bf16 inputs stay bf16 across the pallas_call boundary
    # (upcast happens in-kernel; reference uses the same bf16-rounded values).
    got3 = jax.block_until_ready(
        integral_mse_loss(out2.astype(jnp.bfloat16), tgt2.astype(jnp.bfloat16),
                          tw2.astype(jnp.bfloat16), True, tile_b=16))
    want3 = _reference(out2.astype(jnp.bfloat16).astype(jnp.float32),
                       tgt2.astype(jnp.bfloat16).astype(jnp.float32),
                       tw2.astype(jnp.bfloat16).astype(jnp.float32), True)
    assert jnp.allclose(got3, want3, rtol=1e-3, atol=1e-4), (got3, want3)

    # --- Test 4: single-step path with (B, J, 2) weight (default tile_b=None).
    got4 = jax.block_until_ready(integral_mse_loss(out2, tgt2, tw2, False))
    want4 = _reference(out2, tgt2, tw2, False)
    assert jnp.allclose(got4, want4, rtol=1e-5, atol=1e-5), (got4, want4)

    print("KERNEL_OK")
</pallas_src>

<mosaic_0001>
module attributes {stable_mosaic.version = 11 : i64} {
  func.func @_single_step_kernel(%arg0: i32, %arg1: memref<1x1xf32, #tpu.memory_space<smem>>, %arg2: memref<2x48xf32, #tpu.memory_space<vmem>>, %arg3: memref<2x48xf32, #tpu.memory_space<vmem>>, %arg4: memref<2x48xf32, #tpu.memory_space<vmem>>, %arg5: memref<1x1xf32, #tpu.memory_space<vmem>>) attributes {dimension_semantics = [#tpu.dimension_semantics<arbitrary>], iteration_bounds = array<i64: 1>, scalar_prefetch = 0 : i64, scratch_operands = 0 : i64, tpu.core_type = #tpu.core_type<tc>, window_params = [{transform_indices = @transform_0, window_bounds = array<i64: 1, 1>}, {pipeline_mode = #tpu.pipeline_mode<synchronous>, transform_indices = @transform_1, window_bounds = array<i64: 2, 48>}, {pipeline_mode = #tpu.pipeline_mode<synchronous>, transform_indices = @transform_2, window_bounds = array<i64: 2, 48>}, {pipeline_mode = #tpu.pipeline_mode<synchronous>, transform_indices = @transform_3, window_bounds = array<i64: 2, 48>}, {pipeline_mode = #tpu.pipeline_mode<synchronous>, transform_indices = @transform_4, window_bounds = array<i64: 1, 1>}]} {
    %c0 = arith.constant 0 : index
    %c0_0 = arith.constant 0 : index
    %0 = vector.load %arg2[%c0, %c0_0] : memref<2x48xf32, #tpu.memory_space<vmem>>, vector<2x48xf32>
    %c0_1 = arith.constant 0 : index
    %c0_2 = arith.constant 0 : index
    %1 = vector.load %arg3[%c0_1, %c0_2] : memref<2x48xf32, #tpu.memory_space<vmem>>, vector<2x48xf32>
    %c0_3 = arith.constant 0 : index
    %c0_4 = arith.constant 0 : index
    %2 = vector.load %arg4[%c0_3, %c0_4] : memref<2x48xf32, #tpu.memory_space<vmem>>, vector<2x48xf32>
    %3 = arith.subf %0, %1 : vector<2x48xf32>
    %4 = arith.mulf %3, %3 : vector<2x48xf32>
    %5 = arith.mulf %4, %2 : vector<2x48xf32>
    %6 = vector.shape_cast %5 : vector<2x48xf32> to vector<1x2x48xf32>
    %cst = arith.constant dense<0.000000e+00> : vector<1xf32>
    %7 = vector.multi_reduction <add>, %6, %cst [1, 2] : vector<1x2x48xf32> to vector<1xf32>
    %8 = vector.shape_cast %7 : vector<1xf32> to vector<1x1x1xf32>
    %9 = vector.extract %8[0, 0, 0] : f32 from vector<1x1x1xf32>
    %10 = vector.broadcast %9 : f32 to vector<1x1xf32>
    %c0_5 = arith.constant 0 : index
    %c0_6 = arith.constant 0 : index
    %11 = memref.load %arg1[%c0_5, %c0_6] : memref<1x1xf32, #tpu.memory_space<smem>>
    %12 = vector.broadcast %11 : f32 to vector<1x1xf32>
    %13 = arith.mulf %10, %12 : vector<1x1xf32>
    %c0_7 = arith.constant 0 : index
    %c0_8 = arith.constant 0 : index
    %14 = vector.load %arg5[%c0_7, %c0_8] : memref<1x1xf32, #tpu.memory_space<vmem>>, vector<1x1xf32>
    tpu.vector_store %arg5[%c0_7, %c0_8], %13 {strides = array<i32>} : memref<1x1xf32, #tpu.memory_space<vmem>>, vector<1x1xf32>,
    return
  }
  func.func @transform_0(%arg0: i32) -> (i32, i32) {
    %c0_i32 = arith.constant 0 : i32
    %c0_i32_0 = arith.constant 0 : i32
    %c0_i32_1 = arith.constant 0 : i32
    return %c0_i32, %c0_i32_0 : i32, i32
  }
  func.func @transform_1(%arg0: i32) -> (i32, i32) {
    %c0_i32 = arith.constant 0 : i32
    %c0_i32_0 = arith.constant 0 : i32
    %c0_i32_1 = arith.constant 0 : i32
    return %c0_i32, %c0_i32_0 : i32, i32
  }
  func.func @transform_2(%arg0: i32) -> (i32, i32) {
    %c0_i32 = arith.constant 0 : i32
    %c0_i32_0 = arith.constant 0 : i32
    %c0_i32_1 = arith.constant 0 : i32
    return %c0_i32, %c0_i32_0 : i32, i32
  }
  func.func @transform_3(%arg0: i32) -> (i32, i32) {
    %c0_i32 = arith.constant 0 : i32
    %c0_i32_0 = arith.constant 0 : i32
    %c0_i32_1 = arith.constant 0 : i32
    return %c0_i32, %c0_i32_0 : i32, i32
  }
  func.func @transform_4(%arg0: i32) -> (i32, i32) {
    %c0_i32 = arith.constant 0 : i32
    %c0_i32_0 = arith.constant 0 : i32
    %c0_i32_1 = arith.constant 0 : i32
    return %c0_i32, %c0_i32_0 : i32, i32
  }
}

</mosaic_0001>

<llo_original>
// kernel: tpu_custom_call.1
$region0: #{tpu_custom_call.1}
  #allocation0 [shape = 'u32[]', space=smem, size = 0x4, offset = 0x4, fixed_abs, tag = 'smem constant byte address 0x4 - core index']
  #allocation1 [shape = 'u32[144,128]{1,0:T(1,128)}', space=vmem, size = 0x12000, scoped, tag = 'internal scratch']
  #allocation2 [shape = 'f32[1,1]{1,0:T(1,128)S(6)}', space=smem, size = 0x200, scoped, tag = 'scoped memory for tpu_custom_call.1']
  %s0 = inlined_call_operand.<no memory space> [shape: f32[1,1], index: 0, kind: input, shape index: {}]
  %s1 = inlined_call_operand.vmem [shape: f32[2,48], index: 1, kind: input, shape index: {}]
  %s2 = inlined_call_operand.hbm [shape: f32[2,48], index: 2, kind: input, shape index: {}]
  %s3 = inlined_call_operand.vmem [shape: f32[2,48], index: 3, kind: input, shape index: {}]
  %s4 = inlined_call_operand.hbm [shape: f32[1,1], index: 4, kind: output, shape index: {}]
  %s5 = sld [smem:[#allocation0]]
  $region30: #{tpu_custom_call.1} parent=0
    _
  %s7 = ssub.s32 1, %s5
  %s8 = scalar_select 0, %s7, %s5
  %9 = sst [smem:[#allocation2]] %s0
  $region1: #{tpu_custom_call.1} parent=0
    #allocation3 [shape = 'u8[1024]{0}', space=vmem, size = 0x400, scoped, tag = 'input window, operand 2, single buffered']
    #allocation4 [shape = 's32[1]{0}', space=sflag, size = 0x4, scoped, tag = 'scoped memory for tpu_custom_call.1']
    #allocation5 [shape = 's32[1]{0}', space=sflag, size = 0x4, scoped, tag = 'scoped memory for tpu_custom_call.1']
    #allocation6 [shape = 'u8[512]{0}', space=vmem, size = 0x400, scoped, tag = 'output window, operand 0, single buffered']
    %10 = vsyncpa [#allocation4], 0
    %11 = vsyncpa [#allocation5], 0
    // Predicated region
    $region2: #{tpu_custom_call.1} parent=1 // pred_check
      _
    $region3: #{tpu_custom_call.1} parent=1 // pred_check_branch
      %13 = sbr.rel (0) target = $region5
    $region4: #{tpu_custom_call.1} parent=1 // pred_region
      _
    $region5: #{tpu_custom_call.1} parent=1 // pred_fallthru
      _
    // Predicated region
    $region6: #{tpu_custom_call.1} parent=1 // pred_check
      _
    $region7: #{tpu_custom_call.1} parent=1 // pred_check_branch
      %15 = sbr.rel (0) target = $region9
    $region8: #{tpu_custom_call.1} parent=1 // pred_region
      _
    $region9: #{tpu_custom_call.1} parent=1 // pred_fallthru
      _
    // Predicated region
    $region10: #{tpu_custom_call.1} parent=1 // pred_check
      _
    $region11: #{tpu_custom_call.1} parent=1 // pred_check_branch
      %17 = sbr.rel (0) target = $region13
    $region12: #{tpu_custom_call.1} parent=1 // pred_region
      %s19 = ssub.s32 32, 32
      %20 = vsyncadd [#allocation4], %s19
      %s22 = sshll.u32 [#allocation3], 4
      %s23 = int_to_ptr.vmem [resolvable:$true] %s22
      %25 = dma.hbm_to_vmem [thread:$0]  %s2, 32, %s23, [#allocation4]
    $region13: #{tpu_custom_call.1} parent=1 // pred_fallthru
      _
    // Predicated region
    $region14: #{tpu_custom_call.1} parent=1 // pred_check
      _
    $region15: #{tpu_custom_call.1} parent=1 // pred_check_branch
      %27 = sbr.rel (0) target = $region17
    $region16: #{tpu_custom_call.1} parent=1 // pred_region
      _
    $region17: #{tpu_custom_call.1} parent=1 // pred_fallthru
      _
    // Predicated region
    $region18: #{tpu_custom_call.1} parent=1 // pred_check
      _
    $region19: #{tpu_custom_call.1} parent=1 // pred_check_branch
      %29 = sbr.rel (0) target = $region21
    $region20: #{tpu_custom_call.1} parent=1 // pred_region
      %30 = dma.done [#allocation4], 32
    $region21: #{tpu_custom_call.1} parent=1 // pred_fallthru
      _
    %v31 = vld [vmem:[%s1] sm:$0x3]
    %v32 = vld [vmem:[#allocation3] sm:$0x3]
    %v33 = vld [vmem:[%s3] sm:$0x3]
    %v34 = vsub.f32 %v31, %v32
    %v35 = vmul.f32 %v34, %v34
    %v36 = vmul.f32 %v35, %v33
    %vm37 = vcmask 386048
    %v38 = vsel %vm37, %v36, 0.0
    %39 = vadd.xlane.f32.xlu0 %v38
    %v40 = vpop.xlane.xlu0 %39
    %v41 = vrot.slane %v40, 4
    %v42 = vadd.f32 %v40, %v41
    %v43 = vrot.slane %v42, 2
    %v44 = vadd.f32 %v42, %v43
    %v45 = vrot.slane %v44, 1
    %v46 = vadd.f32 %v44, %v45
    %s47 = vtos %v46
    %v48 = vstv %s47
    %s49 = sld [smem:[#allocation2]]
    %v50 = vstv %s49
    %v51 = vmul.f32 %v48, %v50
    %vm52 = vcmask 0
    %53 = vst.msk [vmem:[#allocation6] sm:$0x1] %vm52, %v51
    // Predicated region
    $region22: #{tpu_custom_call.1} parent=1 // pred_check
      _
    $region23: #{tpu_custom_call.1} parent=1 // pred_check_branch
      %55 = sbr.rel (0) target = $region25
    $region24: #{tpu_custom_call.1} parent=1 // pred_region
      %s57 = ssub.s32 16, 16
      %58 = vsyncadd [#allocation5], %s57
      %s60 = sshll.u32 [#allocation6], 4
      %s61 = int_to_ptr.vmem [resolvable:$true] %s60
      %63 = dma.vmem_to_hbm [thread:$0]  %s61, 16, %s4, [#allocation5]
    $region25: #{tpu_custom_call.1} parent=1 // pred_fallthru
      _
    // Predicated region
    $region26: #{tpu_custom_call.1} parent=1 // pred_check
      _
    $region27: #{tpu_custom_call.1} parent=1 // pred_check_branch
      %65 = sbr.rel (0) target = $region29
    $region28: #{tpu_custom_call.1} parent=1 // pred_region
      %66 = dma.done [#allocation5], 16
    $region29: #{tpu_custom_call.1} parent=1 // pred_fallthru
      _
    %67 = vsyncpa [#allocation4], 1
    %68 = vsyncpa [#allocation5], 1

</llo_original>
